<compile_context>
chip_gen: v6e
topology: v6e:2x2x1
jax: 0.10.0
libtpu: 0.0.40
codegen_flags: <defaults>
</compile_context>

<pallas_src>
import functools
import math

import jax
import jax.numpy as jnp
from jax import lax
from jax.experimental import pallas as pl
from jax.experimental.pallas import tpu as pltpu

PAD = 0  # padding index (PAD constant from otrans)

_V_CHUNK_MAX = 2048    # lane-strip width for the vocab reduction axis
_MAX_ROW_TILE = 1024   # hard cap on rows per tile


def _label_smoothing_kernel(tgt_ref, logits_ref, out_ref,
                            m_ref, s_ref, w_ref, *,
                            n_rows, vocab_size, v_chunk, smoothing, ragged_v):
    i = pl.program_id(0)            # row-tile index ("parallel")
    j = pl.program_id(1)            # vocab-chunk index ("arbitrary" / reduction)
    nj = pl.num_programs(1)

    @pl.when(j == 0)
    def _init():
        m_ref[...] = jnp.full_like(m_ref, -jnp.inf)
        s_ref[...] = jnp.zeros_like(s_ref)
        w_ref[...] = jnp.zeros_like(w_ref)

    tgt = tgt_ref[...]                                    # (TM, 1) int32; -1 = masked row
    xc = logits_ref[...].astype(jnp.float32)              # (TM, C)

    col = j * v_chunk + lax.broadcasted_iota(jnp.int32, xc.shape, 1)
    if ragged_v:
        # Partial last vocab chunk: out-of-bounds lanes hold unspecified data.
        # Force them to -inf so they drop out of the max and of exp(); the
        # weighted-sum contribution is masked below.  Only costs anything when
        # V % v_chunk != 0.
        lane_ok = col < vocab_size
        xc = jnp.where(lane_ok, xc, -jnp.inf)

    low = smoothing / (vocab_size - 1)
    high = 1.0 - smoothing

    # --- online log-sum-exp across vocab chunks ---
    m_prev = m_ref[...]                                             # (TM, 1)
    m_new = jnp.maximum(m_prev, jnp.max(xc, axis=-1, keepdims=True))
    p = jnp.exp(xc - m_new)                                         # (TM, C); -inf lanes -> 0
    alpha = jnp.exp(m_prev - m_new)                                 # == 0 at j == 0
    s_ref[...] = alpha * s_ref[...] + jnp.sum(p, axis=-1, keepdims=True)

    # --- sum_v conf_v * x_v, accumulated chunk by chunk ---
    conf = jnp.where(col == tgt, high, low)                         # (TM, C)
    cw = conf * xc
    if ragged_v:
        cw = jnp.where(lane_ok, cw, 0.0)
    w_ref[...] = w_ref[...] + jnp.sum(cw, axis=-1, keepdims=True)
    m_ref[...] = m_new

    @pl.when(j == nj - 1)
    def _finalize():
        tm = tgt.shape[0]
        lse = m_ref[...] + jnp.log(s_ref[...])                      # (TM, 1)

        # sum_v conf_v * log(conf_v): trace-time constant.  The Python branches
        # also guard smoothing == 0 (0 * log 0 must contribute 0).
        term1 = 0.0
        if smoothing > 0.0:
            term1 += (vocab_size - 1) * low * math.log(low)
        if high > 0.0:
            term1 += high * math.log(high)

        # KL(conf || softmax(x)) per row = term1 + lse - sum_v conf_v * x_v
        row_loss = term1 + lse - w_ref[...]                         # (TM, 1)

        # Mask padded / externally-masked rows (tgt == -1) and the garbage rows
        # of a partial last row tile (the wrapper no longer pads the logits).
        row_idx = i * tm + lax.broadcasted_iota(jnp.int32, (tm, 1), 0)
        valid = (tgt >= 0) & (row_idx < n_rows)
        row_loss = jnp.where(valid, row_loss, 0.0)

        # Single lane-dense partial block: sublane 0 = loss sum, 1 = valid count.
        sub = lax.broadcasted_iota(jnp.int32, out_ref.shape, 1)
        out_ref[...] = jnp.where(sub == 0, jnp.sum(row_loss),
                                 jnp.sum(valid.astype(jnp.float32)))


def _round_up(x, m):
    return (x + m - 1) // m * m


def _sublane_multiple(itemsize):
    return {4: 8, 2: 16, 1: 32}.get(itemsize, 8)


def _vmem_capacity_bytes():
    try:
        cap = int(getattr(pltpu.get_tpu_info(), "vmem_capacity_bytes", 0))
        if cap > 0:
            return cap
    except Exception:
        pass
    return 64 * 1024 * 1024      # conservative default (v7x per-TC VMEM)


def _choose_tiles(n_rows, vocab, in_bytes):
    """Pick (row_tile, v_chunk, vmem_limit_bytes) for the 2-D grid."""
    vmem_cap = _vmem_capacity_bytes()
    budget = int(0.35 * vmem_cap)                       # inputs + in-kernel temps
    vmem_limit = int(min(0.6 * vmem_cap, 64 * 1024 * 1024))

    v_chunk = vocab if vocab <= _V_CHUNK_MAX else _V_CHUNK_MAX

    # Per row: double-buffered logits strip + ~6 f32-sized per-chunk temps
    # (f32 cast, iota, exp, conf, conf*x, lane mask) the body can materialize.
    per_row = 2 * v_chunk * in_bytes + 6 * v_chunk * 4 + 64
    sub = _sublane_multiple(in_bytes)

    t = max(sub, (budget // per_row) // sub * sub)
    t = min(t, _MAX_ROW_TILE)
    # Keep >= ~4 row tiles when the problem allows (v7x megacore sharding).
    t = min(t, _round_up(pl.cdiv(n_rows, 4), sub))
    t = min(t, _round_up(n_rows, sub))
    t = max(t, sub)
    return int(t), int(v_chunk), vmem_limit


def label_smoothing_loss(logits, target, mask=None, *,
                         size, smoothing=0.1, padding_idx=PAD,
                         normalize_length=True, row_tile=None, v_chunk=None):
    """Pallas implementation of LabelSmoothingLoss.forward."""
    assert logits.ndim == 3 and logits.shape[-1] == size
    B, L, V = logits.shape
    N = B * L
    itemsize = jnp.dtype(logits.dtype).itemsize

    # Logits stay in their input dtype (bf16 stays bf16 -> half the HBM stream);
    # the row-major reshape is free.
    logits2 = logits.reshape(N, V)

    # Fold pad mask + optional external mask into the target (masked rows -> -1).
    # This matches the module: externally-masked rows are excluded from both the
    # loss sum and the `total` denominator.
    tgt = target.reshape(N).astype(jnp.int32)
    invalid = tgt == padding_idx
    if mask is not None:
        invalid = invalid | mask.reshape(N).astype(jnp.bool_)
    tgt = jnp.where(invalid, jnp.int32(-1), tgt).reshape(N, 1)

    auto_rt, auto_vc, vmem_limit = _choose_tiles(N, V, itemsize)
    if row_tile is None:
        row_tile = auto_rt
    if v_chunk is None:
        v_chunk = auto_vc
    row_tile = int(row_tile)
    v_chunk = int(v_chunk)
    num_row_tiles = int(pl.cdiv(N, row_tile))
    num_v_chunks = int(pl.cdiv(V, v_chunk))
    ragged_v = (V % v_chunk) != 0

    kernel = functools.partial(
        _label_smoothing_kernel,
        n_rows=N, vocab_size=V, v_chunk=v_chunk,
        smoothing=float(smoothing), ragged_v=bool(ragged_v))

    cost = pl.CostEstimate(
        flops=int(8 * N * V),
        transcendentals=int(N * V),
        bytes_accessed=int(N * V * itemsize + N * 4 + num_row_tiles * 2 * 128 * 4))

    out = pl.pallas_call(
        kernel,
        out_shape=jax.ShapeDtypeStruct((num_row_tiles, 2, 128), jnp.float32),
        grid_spec=pltpu.PrefetchScalarGridSpec(
            num_scalar_prefetch=0,
            grid=(num_row_tiles, num_v_chunks),
            in_specs=[
                pl.BlockSpec((row_tile, 1), lambda i, j: (i, 0)),
                pl.BlockSpec((row_tile, v_chunk), lambda i, j: (i, j)),
            ],
            out_specs=pl.BlockSpec((1, 2, 128), lambda i, j: (i, 0, 0)),
            scratch_shapes=[pltpu.VMEM((row_tile, 1), jnp.float32)
                            for _ in range(3)],
        ),
        compiler_params=pltpu.CompilerParams(
            dimension_semantics=("parallel", "arbitrary"),
            vmem_limit_bytes=vmem_limit),
        cost_estimate=cost,
    )(tgt, logits2)

    loss_sum = jnp.sum(out[:, 0, 0])
    count = jnp.sum(out[:, 1, 0])
    # The PyTorch module divides by logits.size(0) AFTER the reshape to
    # (-1, size), i.e. by B*L, when normalize_length=False.  Division by zero
    # when every row is masked and normalize_length=True matches the reference.
    denom = count if normalize_length else jnp.float32(N)
    return loss_sum / denom


def _reference(logits, target, mask, *, size, smoothing, padding_idx,
               normalize_length):
    """Pure-JAX reference matching the PyTorch module."""
    B, L, V = logits.shape
    pad_mask = target == padding_idx
    if mask is not None:
        m = (pad_mask.astype(jnp.int32) + mask.astype(jnp.int32)) > 0
    else:
        m = pad_mask
    lg = logits.reshape(-1, V).astype(jnp.float32)
    tgt = target.reshape(-1)
    low = smoothing / (V - 1)
    conf = jnp.full((B * L, V), low, jnp.float32)
    conf = conf.at[jnp.arange(B * L), tgt].set(1.0 - smoothing)
    logp = jax.nn.log_softmax(lg, axis=-1)
    loss = jnp.sum(conf * (jnp.log(conf) - logp), axis=-1)
    mflat = m.reshape(-1)
    total = jnp.sum(~mflat)
    denom = total if normalize_length else (B * L)
    return jnp.sum(jnp.where(mflat, 0.0, loss)) / denom


if __name__ == "__main__":
    key = jax.random.PRNGKey(0)

    # Test 1: f32 logits, external mask, normalize_length=True (single vocab chunk).
    B, L, V = 2, 8, 32
    k1, k2 = jax.random.split(key, 2)
    logits = jax.random.normal(k1, (B, L, V), jnp.float32)
    target = jax.random.randint(k2, (B, L), 0, V, jnp.int32)
    ext_mask = jnp.zeros((B, L), jnp.bool_).at[:, -1].set(True)

    loss = label_smoothing_loss(logits, target, ext_mask, size=V,
                                smoothing=0.1, padding_idx=PAD,
                                normalize_length=True)
    loss = jax.block_until_ready(loss)
    ref = _reference(logits, target, ext_mask, size=V, smoothing=0.1,
                     padding_idx=PAD, normalize_length=True)
    assert jnp.allclose(loss, ref, rtol=1e-5, atol=1e-5), (loss, ref)

    # Test 2: bf16 logits, ragged N (partial last row tile, no logits pad),
    # no external mask, normalize_length=False.
    B2, L2, V2 = 3, 5, 64
    k3, k4 = jax.random.split(k1, 2)
    logits2 = jax.random.normal(k3, (B2, L2, V2), jnp.float32)
    target2 = jax.random.randint(k4, (B2, L2), 0, V2, jnp.int32)
    loss2 = label_smoothing_loss(logits2.astype(jnp.bfloat16), target2, None,
                                 size=V2, smoothing=0.1, padding_idx=PAD,
                                 normalize_length=False)
    loss2 = jax.block_until_ready(loss2)
    ref2 = _reference(logits2.astype(jnp.bfloat16).astype(jnp.float32),
                      target2, None, size=V2, smoothing=0.1, padding_idx=PAD,
                      normalize_length=False)
    assert jnp.allclose(loss2, ref2, rtol=1e-3, atol=1e-3), (loss2, ref2)

    # Test 3: bf16 logits, V > chunk (exercises the vocab-chunked online-LSE
    # path with a ragged last chunk) and a ragged row count.
    B3, L3, V3 = 4, 6, 4100
    k5, k6 = jax.random.split(k3, 2)
    logits3 = jax.random.normal(k5, (B3, L3, V3), jnp.float32)
    target3 = jax.random.randint(k6, (B3, L3), 0, V3, jnp.int32)
    target3 = target3.at[0, 0].set(PAD)   # exercise the padding mask
    ext_mask3 = jnp.zeros((B3, L3), jnp.bool_).at[:, -1].set(True)
    loss3 = label_smoothing_loss(logits3.astype(jnp.bfloat16), target3,
                                 ext_mask3, size=V3, smoothing=0.1,
                                 padding_idx=PAD, normalize_length=True)
    loss3 = jax.block_until_ready(loss3)
    ref3 = _reference(logits3.astype(jnp.bfloat16).astype(jnp.float32),
                      target3, ext_mask3, size=V3, smoothing=0.1,
                      padding_idx=PAD, normalize_length=True)
    assert jnp.allclose(loss3, ref3, rtol=2e-3, atol=2e-3), (loss3, ref3)

    print("KERNEL_OK")
</pallas_src>

<mosaic_0001>
module attributes {stable_mosaic.version = 11 : i64} {
  func.func @_label_smoothing_kernel(%arg0: i32, %arg1: i32, %arg2: memref<8x1xi32, #tpu.memory_space<vmem>>, %arg3: memref<8x32xf32, #tpu.memory_space<vmem>>, %arg4: memref<1x2x128xf32, #tpu.memory_space<vmem>>, %arg5: memref<8x1xf32, #tpu.memory_space<vmem>>, %arg6: memref<8x1xf32, #tpu.memory_space<vmem>>, %arg7: memref<8x1xf32, #tpu.memory_space<vmem>>) attributes {dimension_semantics = [#tpu.dimension_semantics<parallel>, #tpu.dimension_semantics<arbitrary>], iteration_bounds = array<i64: 2, 1>, scalar_prefetch = 0 : i64, scratch_operands = 3 : i64, tpu.core_type = #tpu.core_type<tc>, window_params = [{transform_indices = @transform_0, window_bounds = array<i64: 8, 1>}, {transform_indices = @transform_1, window_bounds = array<i64: 8, 32>}, {transform_indices = @transform_2, window_bounds = array<i64: 1, 2, 128>}]} {
    %c0_i32 = arith.constant 0 : i32
    %0 = arith.cmpi eq, %arg1, %c0_i32 : i32
    %1 = arith.extui %0 : i1 to i32
    %c0_i32_0 = arith.constant 0 : i32
    %2 = arith.cmpi ne, %1, %c0_i32_0 : i32
    scf.if %2 {
      %cst_22 = arith.constant 0xFF800000 : f32
      %39 = vector.broadcast %cst_22 : f32 to vector<8x1xf32>
      %c0_23 = arith.constant 0 : index
      %c0_24 = arith.constant 0 : index
      %40 = vector.load %arg5[%c0_23, %c0_24] : memref<8x1xf32, #tpu.memory_space<vmem>>, vector<8x1xf32>
      tpu.vector_store %arg5[%c0_23, %c0_24], %39 {strides = array<i32>} : memref<8x1xf32, #tpu.memory_space<vmem>>, vector<8x1xf32>,
      %cst_25 = arith.constant 0.000000e+00 : f32
      %41 = vector.broadcast %cst_25 : f32 to vector<8x1xf32>
      %c0_26 = arith.constant 0 : index
      %c0_27 = arith.constant 0 : index
      %42 = vector.load %arg6[%c0_26, %c0_27] : memref<8x1xf32, #tpu.memory_space<vmem>>, vector<8x1xf32>
      tpu.vector_store %arg6[%c0_26, %c0_27], %41 {strides = array<i32>} : memref<8x1xf32, #tpu.memory_space<vmem>>, vector<8x1xf32>,
      %cst_28 = arith.constant 0.000000e+00 : f32
      %43 = vector.broadcast %cst_28 : f32 to vector<8x1xf32>
      %c0_29 = arith.constant 0 : index
      %c0_30 = arith.constant 0 : index
      %44 = vector.load %arg7[%c0_29, %c0_30] : memref<8x1xf32, #tpu.memory_space<vmem>>, vector<8x1xf32>
      tpu.vector_store %arg7[%c0_29, %c0_30], %43 {strides = array<i32>} : memref<8x1xf32, #tpu.memory_space<vmem>>, vector<8x1xf32>,
    } else {
    }
    %c0 = arith.constant 0 : index
    %c0_1 = arith.constant 0 : index
    %3 = vector.load %arg2[%c0, %c0_1] : memref<8x1xi32, #tpu.memory_space<vmem>>, vector<8x1xi32>
    %c0_2 = arith.constant 0 : index
    %c0_3 = arith.constant 0 : index
    %4 = vector.load %arg3[%c0_2, %c0_3] : memref<8x32xf32, #tpu.memory_space<vmem>>, vector<8x32xf32>
    %c32_i32 = arith.constant 32 : i32
    %5 = arith.muli %arg1, %c32_i32 : i32
    %6 = tpu.iota {dimensions = array<i32: 1>} : vector<8x32xi32>
    %7 = vector.broadcast %5 : i32 to vector<8x32xi32>
    %8 = arith.addi %7, %6 : vector<8x32xi32>
    %c0_4 = arith.constant 0 : index
    %c0_5 = arith.constant 0 : index
    %9 = vector.load %arg5[%c0_4, %c0_5] : memref<8x1xf32, #tpu.memory_space<vmem>>, vector<8x1xf32>
    %cst = arith.constant dense<0xFF800000> : vector<8xf32>
    %10 = vector.multi_reduction <maximumf>, %4, %cst [1] : vector<8x32xf32> to vector<8xf32>
    %11 = vector.shape_cast %10 : vector<8xf32> to vector<8x1xf32>
    %12 = arith.maximumf %9, %11 : vector<8x1xf32>
    %13 = vector.broadcast %12 : vector<8x1xf32> to vector<8x32xf32>
    %14 = arith.subf %4, %13 : vector<8x32xf32>
    %15 = math.exp %14 : vector<8x32xf32>
    %16 = arith.subf %9, %12 : vector<8x1xf32>
    %17 = math.exp %16 : vector<8x1xf32>
    %c0_6 = arith.constant 0 : index
    %c0_7 = arith.constant 0 : index
    %18 = vector.load %arg6[%c0_6, %c0_7] : memref<8x1xf32, #tpu.memory_space<vmem>>, vector<8x1xf32>
    %19 = arith.mulf %17, %18 : vector<8x1xf32>
    %cst_8 = arith.constant dense<0.000000e+00> : vector<8xf32>
    %20 = vector.multi_reduction <add>, %15, %cst_8 [1] : vector<8x32xf32> to vector<8xf32>
    %21 = vector.shape_cast %20 : vector<8xf32> to vector<8x1xf32>
    %22 = arith.addf %19, %21 : vector<8x1xf32>
    %c0_9 = arith.constant 0 : index
    %c0_10 = arith.constant 0 : index
    %23 = vector.load %arg6[%c0_9, %c0_10] : memref<8x1xf32, #tpu.memory_space<vmem>>, vector<8x1xf32>
    tpu.vector_store %arg6[%c0_9, %c0_10], %22 {strides = array<i32>} : memref<8x1xf32, #tpu.memory_space<vmem>>, vector<8x1xf32>,
    %24 = vector.broadcast %3 : vector<8x1xi32> to vector<8x32xi32>
    %25 = arith.cmpi eq, %8, %24 : vector<8x32xi32>
    %cst_11 = arith.constant 0.899999976 : f32
    %cst_12 = arith.constant 0.0032258064 : f32
    %26 = vector.broadcast %cst_11 : f32 to vector<8x32xf32>
    %27 = vector.broadcast %cst_12 : f32 to vector<8x32xf32>
    %28 = arith.select %25, %26, %27 : vector<8x32xi1>, vector<8x32xf32>
    %29 = arith.mulf %28, %4 : vector<8x32xf32>
    %c0_13 = arith.constant 0 : index
    %c0_14 = arith.constant 0 : index
    %30 = vector.load %arg7[%c0_13, %c0_14] : memref<8x1xf32, #tpu.memory_space<vmem>>, vector<8x1xf32>
    %cst_15 = arith.constant dense<0.000000e+00> : vector<8xf32>
    %31 = vector.multi_reduction <add>, %29, %cst_15 [1] : vector<8x32xf32> to vector<8xf32>
    %32 = vector.shape_cast %31 : vector<8xf32> to vector<8x1xf32>
    %33 = arith.addf %30, %32 : vector<8x1xf32>
    %c0_16 = arith.constant 0 : index
    %c0_17 = arith.constant 0 : index
    %34 = vector.load %arg7[%c0_16, %c0_17] : memref<8x1xf32, #tpu.memory_space<vmem>>, vector<8x1xf32>
    tpu.vector_store %arg7[%c0_16, %c0_17], %33 {strides = array<i32>} : memref<8x1xf32, #tpu.memory_space<vmem>>, vector<8x1xf32>,
    %c0_18 = arith.constant 0 : index
    %c0_19 = arith.constant 0 : index
    %35 = vector.load %arg5[%c0_18, %c0_19] : memref<8x1xf32, #tpu.memory_space<vmem>>, vector<8x1xf32>
    tpu.vector_store %arg5[%c0_18, %c0_19], %12 {strides = array<i32>} : memref<8x1xf32, #tpu.memory_space<vmem>>, vector<8x1xf32>,
    %c0_i32_20 = arith.constant 0 : i32
    %36 = arith.cmpi eq, %arg1, %c0_i32_20 : i32
    %37 = arith.extui %36 : i1 to i32
    %c0_i32_21 = arith.constant 0 : i32
    %38 = arith.cmpi ne, %37, %c0_i32_21 : i32
    scf.if %38 {
      %c0_22 = arith.constant 0 : index
      %c0_23 = arith.constant 0 : index
      %39 = vector.load %arg5[%c0_22, %c0_23] : memref<8x1xf32, #tpu.memory_space<vmem>>, vector<8x1xf32>
      %c0_24 = arith.constant 0 : index
      %c0_25 = arith.constant 0 : index
      %40 = vector.load %arg6[%c0_24, %c0_25] : memref<8x1xf32, #tpu.memory_space<vmem>>, vector<8x1xf32>
      %41 = math.log %40 : vector<8x1xf32>
      %42 = arith.addf %39, %41 : vector<8x1xf32>
      %cst_26 = arith.constant -0.668481708 : f32
      %43 = vector.broadcast %cst_26 : f32 to vector<8x1xf32>
      %44 = arith.addf %43, %42 : vector<8x1xf32>
      %c0_27 = arith.constant 0 : index
      %c0_28 = arith.constant 0 : index
      %45 = vector.load %arg7[%c0_27, %c0_28] : memref<8x1xf32, #tpu.memory_space<vmem>>, vector<8x1xf32>
      %46 = arith.subf %44, %45 : vector<8x1xf32>
      %c8_i32 = arith.constant 8 : i32
      %47 = arith.muli %arg0, %c8_i32 : i32
      %48 = tpu.iota {dimensions = array<i32: 0>} : vector<8x1xi32>
      %49 = vector.broadcast %47 : i32 to vector<8x1xi32>
      %50 = arith.addi %49, %48 : vector<8x1xi32>
      %c0_i32_29 = arith.constant 0 : i32
      %51 = vector.broadcast %c0_i32_29 : i32 to vector<8x1xi32>
      %52 = arith.cmpi sge, %3, %51 : vector<8x1xi32>
      %c16_i32 = arith.constant 16 : i32
      %53 = vector.broadcast %c16_i32 : i32 to vector<8x1xi32>
      %54 = arith.cmpi slt, %50, %53 : vector<8x1xi32>
      %55 = arith.andi %52, %54 : vector<8x1xi1>
      %cst_30 = arith.constant 0.000000e+00 : f32
      %56 = vector.broadcast %cst_30 : f32 to vector<8x1xf32>
      %57 = arith.select %55, %46, %56 : vector<8x1xi1>, vector<8x1xf32>
      %58 = tpu.iota {dimensions = array<i32: 1>} : vector<1x2x128xi32>
      %c0_i32_31 = arith.constant 0 : i32
      %59 = vector.broadcast %c0_i32_31 : i32 to vector<1x2x128xi32>
      %60 = arith.cmpi eq, %58, %59 : vector<1x2x128xi32>
      %61 = vector.shape_cast %57 : vector<8x1xf32> to vector<1x8x1xf32>
      %cst_32 = arith.constant dense<0.000000e+00> : vector<1xf32>
      %62 = vector.multi_reduction <add>, %61, %cst_32 [1, 2] : vector<1x8x1xf32> to vector<1xf32>
      %63 = vector.shape_cast %62 : vector<1xf32> to vector<1x1x1xf32>
      %64 = vector.extract %63[0, 0, 0] : f32 from vector<1x1x1xf32>
      %65 = arith.extui %55 : vector<8x1xi1> to vector<8x1xi32>
      %66 = arith.sitofp %65 : vector<8x1xi32> to vector<8x1xf32>
      %67 = vector.shape_cast %66 : vector<8x1xf32> to vector<1x8x1xf32>
      %cst_33 = arith.constant dense<0.000000e+00> : vector<1xf32>
      %68 = vector.multi_reduction <add>, %67, %cst_33 [1, 2] : vector<1x8x1xf32> to vector<1xf32>
      %69 = vector.shape_cast %68 : vector<1xf32> to vector<1x1x1xf32>
      %70 = vector.extract %69[0, 0, 0] : f32 from vector<1x1x1xf32>
      %71 = vector.broadcast %64 : f32 to vector<1x2x128xf32>
      %72 = vector.broadcast %70 : f32 to vector<1x2x128xf32>
      %73 = arith.select %60, %71, %72 : vector<1x2x128xi1>, vector<1x2x128xf32>
      %c0_34 = arith.constant 0 : index
      %c0_35 = arith.constant 0 : index
      %c0_36 = arith.constant 0 : index
      %74 = vector.load %arg4[%c0_34, %c0_35, %c0_36] : memref<1x2x128xf32, #tpu.memory_space<vmem>>, vector<1x2x128xf32>
      tpu.vector_store %arg4[%c0_34, %c0_35, %c0_36], %73 {strides = array<i32>} : memref<1x2x128xf32, #tpu.memory_space<vmem>>, vector<1x2x128xf32>,
    } else {
    }
    return
  }
  func.func @transform_0(%arg0: i32, %arg1: i32) -> (i32, i32) {
    %c0_i32 = arith.constant 0 : i32
    %c0_i32_0 = arith.constant 0 : i32
    return %arg0, %c0_i32 : i32, i32
  }
  func.func @transform_1(%arg0: i32, %arg1: i32) -> (i32, i32) {
    %c0_i32 = arith.constant 0 : i32
    return %arg0, %arg1 : i32, i32
  }
  func.func @transform_2(%arg0: i32, %arg1: i32) -> (i32, i32, i32) {
    %c0_i32 = arith.constant 0 : i32
    %c0_i32_0 = arith.constant 0 : i32
    %c0_i32_1 = arith.constant 0 : i32
    return %arg0, %c0_i32, %c0_i32_0 : i32, i32, i32
  }
}

</mosaic_0001>

<llo_original>
// kernel: tpu_custom_call.1
$region0: #{tpu_custom_call.1}
  #allocation0 [shape = 'u32[]', space=smem, size = 0x4, offset = 0x4, fixed_abs, tag = 'smem constant byte address 0x4 - core index']
  #allocation1 [shape = 'u32[144,128]{1,0:T(1,128)}', space=vmem, size = 0x12000, scoped, tag = 'internal scratch']
  #allocation2 [shape = 'f32[8,1]{1,0:T(8,128)}', space=vmem, size = 0x1000, scoped, tag = 'scratch operand']
  #allocation3 [shape = 'f32[8,1]{1,0:T(8,128)}', space=vmem, size = 0x1000, scoped, tag = 'scratch operand']
  #allocation4 [shape = 'f32[8,1]{1,0:T(8,128)}', space=vmem, size = 0x1000, scoped, tag = 'scratch operand']
  %s0 = inlined_call_operand.vmem [shape: s32[16,1], index: 0, kind: input, shape index: {}]
  %s1 = inlined_call_operand.vmem [shape: f32[16,32], index: 1, kind: input, shape index: {}]
  %s2 = inlined_call_operand.hbm [shape: f32[2,2,128], index: 2, kind: output, shape index: {}]
  %s3 = sld [smem:[#allocation0]]
  $region49: #{tpu_custom_call.1} parent=0
    _
  %s5 = ssub.s32 1, %s3
  %s6 = scalar_select 0, %s5, %s3
  $region1: #{tpu_custom_call.1} parent=0
    #allocation5 [shape = 'u8[2048]{0}', space=vmem, size = 0x800, scoped, tag = 'output window, operand 0']
    #allocation6 [shape = 's32[2]{0}', space=sflag, size = 0x8, scoped, tag = 'scoped memory for tpu_custom_call.1']
    %7 = vsyncpa [#allocation6], 0
    %s8 = scalar_lea.sflag [#allocation6], 1
    %9 = vsyncpa %s8, 0
    loop: start=0, step=1, limit=4
    $region2: #{tpu_custom_call.1} parent=1 // loop_pre_header
      _
    $region3: #{tpu_custom_call.1} parent=1 // loop_header
      %s11 = sphi 0, %s15
      %p12 = scmp.ge.s32.totalorder %s11, 4
      %s18 = sphi 0, %s30
      %s19 = sphi 0, %s26
      %s20 = sphi 0, %s18
      %s21 = sphi 0, %s19
      %s22 = sphi 0, %s20
      %s23 = sphi 0, %s21
      %s33 = sphi 0, %s35
      %s36 = sphi 0, %s33
      %s37 = sphi 0, %s36
      %s53 = sphi 0, %s37
      %s61 = sphi 0, %s63
      %s64 = sphi 0, %s61
      %s65 = sphi 0, %s64
      %s81 = sphi 0, %s65
      %s87 = sphi 0, %s89
      %s90 = sphi 0, %s87
      %s91 = sphi 0, %s90
      %s107 = sphi 0, %s91
    $region4: #{tpu_custom_call.1} parent=1 // loop_header_branch
      %14 = sbr.rel (%p12) target = $region8
    $region5: #{tpu_custom_call.1} parent=1 // loop_body
      %s16 = ssub.s32 %s11, 1
      %s17 = ssub.s32 %s11, 2
      %s24 = sadd.s32 1, %s19
      %p25 = scmp.ge.s32.totalorder %s24, 1
      %s26 = scalar_select %p25, 0, %s24
      %s27 = sadd.s32 1, %s18
      %s28 = scalar_select %p25, %s27, %s18
      %p29 = scmp.ge.s32.totalorder %s28, 2
      %s30 = scalar_select %p29, 0, %s28
      %s31 = ssub.s32 %s18, %s30
      %p32 = scmp.eq.s32.totalorder %s31, 0
      %s34 = sadd.s32 %s33, 1
      %s35 = scalar_select %p32, %s33, %s34
      %p38 = pneg %p32
      %p39 = scmp.eq.s32.totalorder %s11, 1
      %p40 = por %p38, %p39
      %p41 = scmp.ne.s32.totalorder %s33, %s36
      %p42 = scmp.eq.s32.totalorder %s11, 0
      %p43 = por %p41, %p42
      %p44 = scmp.ne.s32.totalorder %s33, %s36
      %p45 = scmp.eq.s32.totalorder %s16, 1
      %p46 = por %p44, %p45
      %p47 = scmp.ne.s32.totalorder %s36, %s37
      %p48 = scmp.eq.s32.totalorder %s16, 0
      %p49 = por %p47, %p48
      %p50 = scmp.ne.s32.totalorder %s36, %s37
      %p51 = scmp.eq.s32.totalorder %s17, 1
      %p52 = por %p50, %p51
      %p54 = scmp.ne.s32.totalorder %s37, %s53
      %p55 = scmp.eq.s32.totalorder %s17, 0
      %p56 = por %p54, %p55
      %s57 = ssub.s32 %s18, %s30
      %s58 = ssub.s32 %s19, %s26
      %s59 = sor.u32 %s57, %s58
      %p60 = scmp.eq.s32.totalorder %s59, 0
      %s62 = sadd.s32 %s61, 1
      %s63 = scalar_select %p60, %s61, %s62
      %p66 = pneg %p60
      %p67 = scmp.eq.s32.totalorder %s11, 1
      %p68 = por %p66, %p67
      %p69 = scmp.ne.s32.totalorder %s61, %s64
      %p70 = scmp.eq.s32.totalorder %s11, 0
      %p71 = por %p69, %p70
      %p72 = scmp.ne.s32.totalorder %s61, %s64
      %p73 = scmp.eq.s32.totalorder %s16, 1
      %p74 = por %p72, %p73
      %p75 = scmp.ne.s32.totalorder %s64, %s65
      %p76 = scmp.eq.s32.totalorder %s16, 0
      %p77 = por %p75, %p76
      %p78 = scmp.ne.s32.totalorder %s64, %s65
      %p79 = scmp.eq.s32.totalorder %s17, 1
      %p80 = por %p78, %p79
      %p82 = scmp.ne.s32.totalorder %s65, %s81
      %p83 = scmp.eq.s32.totalorder %s17, 0
      %p84 = por %p82, %p83
      %s85 = ssub.s32 %s18, %s30
      %p86 = scmp.eq.s32.totalorder %s85, 0
      %s88 = sadd.s32 %s87, 1
      %s89 = scalar_select %p86, %s87, %s88
      %p92 = pneg %p86
      %p93 = scmp.eq.s32.totalorder %s11, 1
      %p94 = por %p92, %p93
      %p95 = scmp.ne.s32.totalorder %s87, %s90
      %p96 = scmp.eq.s32.totalorder %s11, 0
      %p97 = por %p95, %p96
      %p98 = scmp.ne.s32.totalorder %s87, %s90
      %p99 = scmp.eq.s32.totalorder %s16, 1
      %p100 = por %p98, %p99
      %p101 = scmp.ne.s32.totalorder %s90, %s91
      %p102 = scmp.eq.s32.totalorder %s16, 0
      %p103 = por %p101, %p102
      %p104 = scmp.ne.s32.totalorder %s90, %s91
      %p105 = scmp.eq.s32.totalorder %s17, 1
      %p106 = por %p104, %p105
      %p108 = scmp.ne.s32.totalorder %s91, %s107
      %p109 = scmp.eq.s32.totalorder %s17, 0
      %p110 = por %p108, %p109
      %p111 = scmp.le.s32.totalorder 1, %s11
      %p112 = scmp.lt.s32.totalorder %s11, 3
      %p113 = pnand %p111, %p112
      %p114 = pneg %p113
      // Predicated region
      $region9: #{tpu_custom_call.1} parent=5 // pred_check
        _
      $region10: #{tpu_custom_call.1} parent=5 // pred_check_branch
        %116 = sbr.rel (%p113) target = $region12
      $region11: #{tpu_custom_call.1} parent=5 // pred_region
        %s117 = ssub.s32 %s11, 1
      $region12: #{tpu_custom_call.1} parent=5 // pred_fallthru
        _
      %p118 = scmp.lt.s32.totalorder %s11, 2
      // Predicated region
      $region13: #{tpu_custom_call.1} parent=5 // pred_check
        %p119 = pneg %p118
      $region14: #{tpu_custom_call.1} parent=5 // pred_check_branch
        %121 = sbr.rel (%p119) target = $region16
      $region15: #{tpu_custom_call.1} parent=5 // pred_region
        // Predicated region
        $region17: #{tpu_custom_call.1} parent=15 // pred_check
          %p122 = pneg %p43
        $region18: #{tpu_custom_call.1} parent=15 // pred_check_branch
          %124 = sbr.rel (%p122) target = $region20
        $region19: #{tpu_custom_call.1} parent=15 // pred_region
          %p125 = scmp.lt.s32.totalorder %s18, 1
          %s126 = scalar_select %p125, %s18, 1
          %s127 = smul.addr %s126, 8
          %s128 = scalar_lea.vmem %s0, %s127
        $region20: #{tpu_custom_call.1} parent=15 // pred_fallthru
          _
        // Predicated region
        $region21: #{tpu_custom_call.1} parent=15 // pred_check
          %p129 = pneg %p71
        $region22: #{tpu_custom_call.1} parent=15 // pred_check_branch
          %131 = sbr.rel (%p129) target = $region24
        $region23: #{tpu_custom_call.1} parent=15 // pred_region
          %p132 = scmp.lt.s32.totalorder %s18, 1
          %s133 = scalar_select %p132, %s18, 1
          %p134 = scmp.lt.s32.totalorder %s19, 0
          %s135 = scalar_select %p134, %s19, 0
          %s136 = sadd.s32 %s135, %s133
          %s137 = smul.addr %s136, 8
          %s138 = scalar_lea.vmem %s1, %s137
        $region24: #{tpu_custom_call.1} parent=15 // pred_fallthru
          _
      $region16: #{tpu_custom_call.1} parent=5 // pred_fallthru
        _
      %p139 = scmp.le.s32.totalorder 1, %s11
      %p140 = scmp.lt.s32.totalorder %s11, 3
      %p141 = pnand %p139, %p140
      %p142 = pneg %p141
      // Predicated region
      $region25: #{tpu_custom_call.1} parent=5 // pred_check
        _
      $region26: #{tpu_custom_call.1} parent=5 // pred_check_branch
        %144 = sbr.rel (%p141) target = $region28
      $region27: #{tpu_custom_call.1} parent=5 // pred_region
        %s145 = ssub.s32 %s11, 1
        %p146 = scmp.lt.s32.totalorder %s20, 1
        %s147 = scalar_select %p146, %s20, 1
        %s148 = smul.addr %s147, 8
        %s149 = scalar_lea.vmem %s0, %s148
        %p150 = pneg %p49
        %p151 = pneg %p46
        %p152 = scmp.lt.s32.totalorder %s20, 1
        %s153 = scalar_select %p152, %s20, 1
        %p154 = scmp.lt.s32.totalorder %s21, 0
        %s155 = scalar_select %p154, %s21, 0
        %s156 = sadd.s32 %s155, %s153
        %s157 = smul.addr %s156, 8
        %s158 = scalar_lea.vmem %s1, %s157
        %p159 = pneg %p77
        %p160 = pneg %p74
        %p161 = pneg %p103
        %p162 = pneg %p100
        %s163 = sand.u32 %s90, 1
        %s164 = scalar_lea.sflag [#allocation6], %s163
        %s165 = sand.u32 %s90, 1
        %s166 = smul.addr %s165, 2
        %s167 = scalar_lea.vmem [#allocation5], %s166
        %p168 = scmp.lt.s32.totalorder %s20, 1
        %s169 = scalar_select %p168, %s20, 1
        %s170 = smul.addr %s169, 8
        %s171 = scalar_lea.vmem %s0, %s170
        %p172 = scmp.lt.s32.totalorder %s20, 1
        %s173 = scalar_select %p172, %s20, 1
        %p174 = scmp.lt.s32.totalorder %s21, 0
        %s175 = scalar_select %p174, %s21, 0
        %s176 = sadd.s32 %s175, %s173
        %s177 = smul.addr %s176, 8
        %s178 = scalar_lea.vmem %s1, %s177
        %p179 = scmp.eq.s32.totalorder %s21, 0
        // Predicated region
        $region29: #{tpu_custom_call.1} parent=27 // pred_check
          %p180 = pneg %p179
        $region30: #{tpu_custom_call.1} parent=27 // pred_check_branch
          %182 = sbr.rel (%p180) target = $region32
        $region31: #{tpu_custom_call.1} parent=27 // pred_region
          %vm183 = vcmask 7168
          %184 = vst.msk [vmem:[#allocation2] sm:$0xff] %vm183, -inf
          %185 = vst.msk [vmem:[#allocation3] sm:$0xff] %vm183, 0.0
          %186 = vst.msk [vmem:[#allocation4] sm:$0xff] %vm183, 0.0
        $region32: #{tpu_custom_call.1} parent=27 // pred_fallthru
          _
        %v187 = vld [vmem:[%s171] sm:$0xff]
        %v188 = vld [vmem:[%s178] sm:$0xff]
        %s189 = smul.u32 %s21, 32
        %v190 = vlaneseq
        %v191 = vand.u32 %v190, 127
        %v192 = vstv %s189
        %v193 = vadd.s32 %v192, %v191
        %v194 = vld [vmem:[#allocation2] sm:$0xff]
        %vm195 = vcmask 261120
        %v196 = vsel %vm195, %v188, -inf
        %197 = vmax.xlane.f32.xlu0 %v196
        %v198 = vpop.xlane.xlu0 %197
        %v199 = vmax.f32 %v194, %v198
        %201 = vset.pattern.permute.xlu0 0
        %202 = vperm.xlu0 %201, %v199
        %v203 = vpop.permute.xlu0 %202
        %v205 = vsub.f32 %v188, %v203
        %v206 = vmul.f32 %v205, 1.442695
        %v207 = vpow.pop %v206
        %v208 = vsub.f32 %v194, %v199
        %v209 = vmul.f32 %v208, 1.442695
        %v210 = vpow.pop %v209
        %v211 = vld [vmem:[#allocation3] sm:$0xff]
        %v212 = vmul.f32 %v210, %v211
        %v213 = vsel %vm195, %v207, 0.0
        %214 = vadd.xlane.f32.xlu0 %v213
        %v215 = vpop.xlane.xlu0 %214
        %v216 = vadd.f32 %v212, %v215
        %vm217 = vcmask 7168
        %218 = vst.msk [vmem:[#allocation3] sm:$0xff] %vm217, %v216
        %219 = vset.pattern.permute.xlu0 0
        %220 = vperm.xlu0 %219, %v187
        %v221 = vpop.permute.xlu0 %220
        %vm222 = vcmp.eq.s32.totalorder %v193, %v221
        %v223 = vsel %vm222, 0.9, 0.0032258064
        %v224 = vmul.f32 %v223, %v188
        %v225 = vld [vmem:[#allocation4] sm:$0xff]
        %v226 = vsel %vm195, %v224, 0.0
        %227 = vadd.xlane.f32.xlu0 %v226
        %v228 = vpop.xlane.xlu0 %227
        %v229 = vadd.f32 %v225, %v228
        %230 = vst.msk [vmem:[#allocation4] sm:$0xff] %vm217, %v229
        %231 = vst.msk [vmem:[#allocation2] sm:$0xff] %vm217, %v199
        // Predicated region
        $region33: #{tpu_custom_call.1} parent=27 // pred_check
          %p232 = pneg %p179
        $region34: #{tpu_custom_call.1} parent=27 // pred_check_branch
          %234 = sbr.rel (%p232) target = $region36
        $region35: #{tpu_custom_call.1} parent=27 // pred_region
          %v235 = vld [vmem:[#allocation2] sm:$0xff]
          %v236 = vld [vmem:[#allocation3] sm:$0xff]
          %v237 = vlog2.pop %v236
          %v238 = vmul.f32 %v237, 0.6931472
          %v239 = vadd.f32 %v235, %v238
          %v240 = vadd.f32 %v239, -0.6684817
          %v241 = vld [vmem:[#allocation4] sm:$0xff]
          %v242 = vsub.f32 %v240, %v241
          %s243 = smul.u32 %s20, 8
          %v244 = vlaneseq
          %v245 = vshrl.u32 %v244, 7
          %v246 = vstv %s243
          %v247 = vadd.s32 %v246, %v245
          %vm248 = vcmp.ge.s32.totalorder %v187, 0
          %vm249 = vcmp.lt.s32.totalorder %v247, 16
          %vm250 = vmand %vm248, %vm249
          %v251 = vsel %vm250, %v242, 0.0
          %vm252 = vcmp.eq.s32.totalorder %v245, 0
          %v253 = vsel %vm217, %v251, 0.0
          %254 = vadd.xlane.f32.xlu0 %v253
          %v255 = vpop.xlane.xlu0 %254
          %v256 = vrot.slane %v255, 4
          %v257 = vadd.f32 %v255, %v256
          %v258 = vrot.slane %v257, 2
          %v259 = vadd.f32 %v257, %v258
          %v260 = vrot.slane %v259, 1
          %v261 = vadd.f32 %v259, %v260
          %s262 = vtos %v261
          %v263 = vsel %vm250, 1, 0
          %v264 = vcvt.s32.f32 %v263
          %v265 = vsel %vm217, %v264, 0.0
          %266 = vadd.xlane.f32.xlu0 %v265
          %v267 = vpop.xlane.xlu0 %266
          %v268 = vrot.slane %v267, 4
          %v269 = vadd.f32 %v267, %v268
          %v270 = vrot.slane %v269, 2
          %v271 = vadd.f32 %v269, %v270
          %v272 = vrot.slane %v271, 1
          %v273 = vadd.f32 %v271, %v272
          %s274 = vtos %v273
          %v275 = vstv %s262
          %v276 = vstv %s274
          %v277 = vsel %vm252, %v275, %v276
          %278 = vst [vmem:[%s167] sm:$0x3] %v277
        $region36: #{tpu_custom_call.1} parent=27 // pred_fallthru
          _
        %s279 = sand.u32 %s90, 1
        %s280 = scalar_lea.sflag [#allocation6], %s279
        %s281 = sand.u32 %s90, 1
        %s282 = smul.addr %s281, 2
        %s283 = scalar_lea.vmem [#allocation5], %s282
        // Predicated region
        $region37: #{tpu_custom_call.1} parent=27 // pred_check
          %p284 = pneg %p100
        $region38: #{tpu_custom_call.1} parent=27 // pred_check_branch
          %286 = sbr.rel (%p284) target = $region40
        $region39: #{tpu_custom_call.1} parent=27 // pred_region
          %s288 = ssub.s32 32, 32
          %289 = vsyncadd %s280, %s288
          %s290 = smul.addr %s20, 32
          %s291 = scalar_lea.hbm %s2, %s290
          %s293 = sshll.u32 %s283, 4
          %s294 = int_to_ptr.vmem [resolvable:$true] %s293
          %296 = dma.vmem_to_hbm [thread:$0]  %s294, 32, %s291, %s280
        $region40: #{tpu_custom_call.1} parent=27 // pred_fallthru
          _
      $region28: #{tpu_custom_call.1} parent=5 // pred_fallthru
        _
      %p297 = scmp.le.s32.totalorder 2, %s11
      // Predicated region
      $region41: #{tpu_custom_call.1} parent=5 // pred_check
        %p298 = pneg %p297
      $region42: #{tpu_custom_call.1} parent=5 // pred_check_branch
        %300 = sbr.rel (%p298) target = $region44
      $region43: #{tpu_custom_call.1} parent=5 // pred_region
        %s301 = ssub.s32 %s11, 2
        // Predicated region
        $region45: #{tpu_custom_call.1} parent=43 // pred_check
          %p302 = pneg %p106
        $region46: #{tpu_custom_call.1} parent=43 // pred_check_branch
          %304 = sbr.rel (%p302) target = $region48
        $region47: #{tpu_custom_call.1} parent=43 // pred_region
          %s305 = sand.u32 %s91, 1
          %s306 = scalar_lea.sflag [#allocation6], %s305
          %s307 = sand.u32 %s91, 1
          %s308 = smul.addr %s307, 2
          %s309 = scalar_lea.vmem [#allocation5], %s308
          %310 = dma.done %s306, 32
        $region48: #{tpu_custom_call.1} parent=43 // pred_fallthru
          _
      $region44: #{tpu_custom_call.1} parent=5 // pred_fallthru
        _
    $region6: #{tpu_custom_call.1} parent=1 // loop_footer
      %s15 = sadd.s32 1, %s11
    $region7: #{tpu_custom_call.1} parent=1 // loop_footer_branch
      %10 = sbr.rel target = $region3
    $region8: #{tpu_custom_call.1} parent=1 // loop_exit
      _
    %311 = vsyncpa [#allocation6], 1
    %s312 = scalar_lea.sflag [#allocation6], 1
    %313 = vsyncpa %s312, 1

</llo_original>
